<compile_context>
chip_gen: v5e
topology: v5e:2x2
jax: 0.10.0
libtpu: 0.0.40
codegen_flags: <defaults>
</compile_context>

<pallas_src>
import jax
import jax.numpy as jnp
from jax import lax
from jax.experimental import pallas as pl
from jax.experimental.pallas import tpu as pltpu


_INV_SQRT2 = 0.7071067811865476
_EPS = 1e-6
_TARGET_BLOCK_BYTES = 2 << 20          # ~2 MiB per x block (good on all gens)
_VMEM_LIMIT_BYTES = 32 * 1024 * 1024   # explicit; fits v7x, helps v5e
_MAX_LANE_TILE = 512                   # keeps the resident group matrix <= 1 MiB


# ---------------------------------------------------------------------------
# Shared in-kernel scale math: gelu(norm + bias) / (norm + 1e-6)
# ---------------------------------------------------------------------------
def _scale_from_norm(norm, bias_row, out_dtype):
    z = norm + bias_row                                # broadcast over rows
    gelu = 0.5 * z * (1.0 + lax.erf(z * _INV_SQRT2))   # exact GELU (torch default)
    denom = norm + _EPS
    inv = pl.reciprocal(denom, approx=True)            # EUP slot, not VALU
    if jnp.dtype(out_dtype) == jnp.dtype(jnp.float32):
        inv = inv * (2.0 - denom * inv)                # 1 Newton step -> f32 accuracy
    return gelu * inv


# ---------------------------------------------------------------------------
# Kernel A: PyTorch layout (B, S, F, D) viewed as (R, C) = (B*S, F*D).
# Lanes hold F*D (feature-major, component fastest); the sum of squares over
# each group of D contiguous lanes is a small matmul with a resident
# block-diagonal 0/1 matrix.
# ---------------------------------------------------------------------------
def _modrelu_grouped_kernel(x_ref, bias_ref, g_ref, o_ref):
    x = x_ref[...].astype(jnp.float32)                 # (tR, tC) dense vregs
    x2 = x * x
    # hi/lo split keeps the grouped sum exact to ~f32 regardless of MXU
    # operand rounding (the 0/1 group matrix is exact in any precision).
    hi = x2.astype(jnp.bfloat16).astype(jnp.float32)
    lo = x2 - hi
    g = g_ref[...]                                     # (tC, tC), resident
    ssq = (jnp.dot(hi, g, preferred_element_type=jnp.float32)
           + jnp.dot(lo, g, preferred_element_type=jnp.float32))
    norm = jnp.sqrt(ssq)                               # group sums, lane-broadcast
    scale = _scale_from_norm(norm, bias_ref[...], o_ref.dtype)
    o_ref[...] = (x * scale).astype(o_ref.dtype)


def _choose_lane_tile(total_c, d):
    """Divisor of C, multiple of D, preferably 128-aligned, <= _MAX_LANE_TILE."""
    if total_c <= _MAX_LANE_TILE:
        return total_c
    fallback = None
    for t in range(_MAX_LANE_TILE, d - 1, -1):
        if total_c % t or t % d:
            continue
        if t % 128 == 0:
            return t
        if fallback is None:
            fallback = t
    return fallback if fallback is not None else total_c


def _choose_row_tile(rows, row_elems, itemsize):
    """Row tile: multiple of 8 (or full extent), ~2 MiB blocks, and >= ~8 grid
    steps on large inputs (v7x has two TensorCores; keeps pipelining busy)."""
    if rows <= 8:
        return rows
    cap = max(8, (_TARGET_BLOCK_BYTES // (row_elems * itemsize)) // 8 * 8)
    tr = min(cap, (rows // 8) // 8 * 8) if rows >= 64 else 8
    return max(8, tr)


def modrelu(x, bias):
    """Drop-in for the PyTorch ModReLU.forward: x (B, S, F, D), bias (F,).

    Zero transposes / pads: x is only reshaped (free) to (B*S, F*D)."""
    B, S, F, D = x.shape
    R, C = B * S, F * D
    x2d = x.reshape(R, C)

    tC = _choose_lane_tile(C, D)
    tR = _choose_row_tile(R, tC, x.dtype.itemsize)

    # Resident per-lane bias row: bias_row[c] == bias[c // D]   (tiny: F*D floats).
    bias_row = jnp.repeat(bias.astype(jnp.float32), D).reshape(1, C)
    # Resident block-diagonal "group" matrix: 1 where two lanes belong to the
    # same feature's D components.  tC % D == 0 keeps lane tiles group-aligned.
    gidx = jnp.arange(tC, dtype=jnp.int32) // D
    group_mat = (gidx[:, None] == gidx[None, :]).astype(jnp.float32)

    grid = (pl.cdiv(R, tR), C // tC)
    out2d = pl.pallas_call(
        _modrelu_grouped_kernel,
        out_shape=jax.ShapeDtypeStruct((R, C), x.dtype),
        grid_spec=pl.GridSpec(
            grid=grid,
            in_specs=[
                pl.BlockSpec((tR, tC), lambda i, j: (i, j)),
                pl.BlockSpec((1, tC), lambda i, j: (0, j)),    # tiny, quasi-resident
                pl.BlockSpec((tC, tC), lambda i, j: (0, 0)),   # resident
            ],
            out_specs=pl.BlockSpec((tR, tC), lambda i, j: (i, j)),
        ),
        compiler_params=pltpu.CompilerParams(
            dimension_semantics=("parallel", "parallel"),
            vmem_limit_bytes=_VMEM_LIMIT_BYTES,
        ),
    )(x2d, bias_row, group_mat)
    return out2d.reshape(B, S, F, D)


# ---------------------------------------------------------------------------
# Kernel B: component-major storage (B, D, S, F) — the D reduction is plain
# dense vreg adds over a non-vreg axis (review item 1's 4-D dense blocking).
# ---------------------------------------------------------------------------
def _modrelu_cm_kernel(x_ref, bias_ref, o_ref):
    # x_ref: (D, tM, Lc) — D on a non-vreg axis; (tM, Lc) are dense vregs.
    x = x_ref[...].astype(jnp.float32)
    ssq = jnp.sum(x * x, axis=0, keepdims=True)        # D-1 dense vreg adds
    norm = jnp.sqrt(ssq)                               # (1, tM, Lc)
    scale = _scale_from_norm(norm, bias_ref[...], o_ref.dtype)
    o_ref[...] = (x * scale).astype(o_ref.dtype)       # sublane-free D broadcast


def _choose_cm_lane_tile(n, f, max_lc=2048):
    """Divisor of N=S*F that is a multiple of F (so one bias row is valid for
    every row tile -> resident), preferably 128-aligned."""
    s = n // f
    best_aligned = best_any = None
    for c in range(1, max(1, max_lc // f) + 1):
        if s % c:
            continue
        lc = f * c
        if lc > max_lc:
            break
        best_any = lc
        if lc % 128 == 0:
            best_aligned = lc
    return best_aligned or best_any or f


def modrelu_cm(x_cm, bias):
    """Component-major storage: x_cm (B, D, S, F), bias (F,).

    Same math as `modrelu`; use when activations are already stored
    component-major upstream (no transposes on either path)."""
    B, D, S, F = x_cm.shape
    N = S * F
    Lc = _choose_cm_lane_tile(N, F)
    M = N // Lc
    tM = _choose_row_tile(M, D * Lc, x_cm.dtype.itemsize)
    x4d = x_cm.reshape(B, D, M, Lc)                    # free reshape
    bias_row = jnp.tile(bias.astype(jnp.float32), Lc // F).reshape(1, Lc)

    grid = (B, pl.cdiv(M, tM))
    out = pl.pallas_call(
        _modrelu_cm_kernel,
        out_shape=jax.ShapeDtypeStruct((B, D, M, Lc), x_cm.dtype),
        grid_spec=pl.GridSpec(
            grid=grid,
            in_specs=[
                pl.BlockSpec((None, D, tM, Lc), lambda b, i: (b, 0, i, 0)),
                pl.BlockSpec((1, Lc), lambda b, i: (0, 0)),   # resident
            ],
            out_specs=pl.BlockSpec((None, D, tM, Lc), lambda b, i: (b, 0, i, 0)),
        ),
        compiler_params=pltpu.CompilerParams(
            dimension_semantics=("parallel", "parallel"),
            vmem_limit_bytes=_VMEM_LIMIT_BYTES,
        ),
    )(x4d, bias_row)
    return out.reshape(B, D, S, F)


# ---------------------------------------------------------------------------
# Pure-JAX reference (mirrors the PyTorch module exactly).
# ---------------------------------------------------------------------------
def modrelu_ref(x, bias):
    xf = x.astype(jnp.float32)
    norm = jnp.sqrt(jnp.sum(xf * xf, axis=-1))
    scale = jax.nn.gelu(norm + bias.astype(jnp.float32)[None, None, :],
                        approximate=False)
    scale = scale / (norm + _EPS)
    return xf * scale[..., None]


if __name__ == "__main__":
    B, S, F, D = 2, 8, 32, 4   # batch, seq, features, quaternion components
    key = jax.random.PRNGKey(0)
    kx, kb = jax.random.split(key)
    x = jax.random.normal(kx, (B, S, F, D), dtype=jnp.float32)

    # 1) Module __init__ state: bias = zeros(features).
    bias0 = jnp.zeros((F,), dtype=jnp.float32)
    out0 = jax.block_until_ready(modrelu(x, bias0))
    assert out0.shape == x.shape and out0.dtype == x.dtype
    assert jnp.allclose(out0, modrelu_ref(x, bias0), atol=1e-5, rtol=1e-5), \
        "mismatch (zero bias)"

    # 2) Non-zero (trained) bias exercises the bias-add path.
    bias1 = 0.1 * jax.random.normal(kb, (F,), dtype=jnp.float32)
    out1 = jax.block_until_ready(modrelu(x, bias1))
    ref1 = modrelu_ref(x, bias1)
    assert jnp.allclose(out1, ref1, atol=1e-5, rtol=1e-5), "mismatch (nonzero bias)"

    # 3) Ragged row count (B*S not a multiple of the row tile): handled by the
    #    cdiv grid + Pallas boundary masking — no pad / slice HBM passes.
    x_odd = x[:, :5]                                    # (2, 5, 32, 4) -> R = 10
    out_odd = jax.block_until_ready(modrelu(x_odd, bias1))
    assert jnp.allclose(out_odd, modrelu_ref(x_odd, bias1),
                        atol=1e-5, rtol=1e-5), "mismatch (ragged rows)"

    # 4) Component-major storage path (x already stored as (B, D, S, F)).
    x_cm = jnp.transpose(x, (0, 3, 1, 2))               # test-only transpose
    out_cm = jax.block_until_ready(modrelu_cm(x_cm, bias1))
    assert jnp.allclose(jnp.transpose(out_cm, (0, 2, 3, 1)), ref1,
                        atol=1e-5, rtol=1e-5), "mismatch (component-major)"

    # 5) bf16 I/O (internal math stays f32) — halves HBM traffic.
    x_bf = x.astype(jnp.bfloat16)
    out_bf = jax.block_until_ready(modrelu(x_bf, bias1))
    assert out_bf.dtype == jnp.bfloat16
    ref_bf = modrelu_ref(x_bf.astype(jnp.float32), bias1)
    assert jnp.allclose(out_bf.astype(jnp.float32), ref_bf,
                        atol=2e-2, rtol=2e-2), "mismatch (bf16 I/O)"

    print("KERNEL_OK")
</pallas_src>

<mosaic_0001>
module attributes {stable_mosaic.version = 11 : i64} {
  func.func @_modrelu_grouped_kernel(%arg0: i32, %arg1: i32, %arg2: memref<8x128xf32, #tpu.memory_space<vmem>>, %arg3: memref<1x128xf32, #tpu.memory_space<vmem>>, %arg4: memref<128x128xf32, #tpu.memory_space<vmem>>, %arg5: memref<8x128xf32, #tpu.memory_space<vmem>>) attributes {dimension_semantics = [#tpu.dimension_semantics<parallel>, #tpu.dimension_semantics<parallel>], iteration_bounds = array<i64: 2, 1>, scalar_prefetch = 0 : i64, scratch_operands = 0 : i64, tpu.core_type = #tpu.core_type<tc>, window_params = [{transform_indices = @transform_0, window_bounds = array<i64: 8, 128>}, {transform_indices = @transform_1, window_bounds = array<i64: 1, 128>}, {pipeline_mode = #tpu.pipeline_mode<synchronous>, transform_indices = @transform_2, window_bounds = array<i64: 128, 128>}, {transform_indices = @transform_3, window_bounds = array<i64: 8, 128>}]} {
    %c0 = arith.constant 0 : index
    %c0_0 = arith.constant 0 : index
    %0 = vector.load %arg2[%c0, %c0_0] : memref<8x128xf32, #tpu.memory_space<vmem>>, vector<8x128xf32>
    %1 = arith.mulf %0, %0 : vector<8x128xf32>
    %2 = arith.truncf %1 : vector<8x128xf32> to vector<8x128xbf16>
    %3 = arith.extf %2 : vector<8x128xbf16> to vector<8x128xf32>
    %4 = arith.subf %1, %3 : vector<8x128xf32>
    %c0_1 = arith.constant 0 : index
    %c0_2 = arith.constant 0 : index
    %5 = vector.load %arg4[%c0_1, %c0_2] : memref<128x128xf32, #tpu.memory_space<vmem>>, vector<128x128xf32>
    %cst = arith.constant dense<0.000000e+00> : vector<8x128xf32>
    %6 = tpu.matmul %3, %5, %cst {dimension_numbers = #tpu.dot_dimension_numbers<[1], [0], [0], [1], [0, 0, 1, 1], [], []>} : vector<8x128xf32>, vector<128x128xf32>, vector<8x128xf32> -> vector<8x128xf32>
    %cst_3 = arith.constant dense<0.000000e+00> : vector<8x128xf32>
    %7 = tpu.matmul %4, %5, %cst_3 {dimension_numbers = #tpu.dot_dimension_numbers<[1], [0], [0], [1], [0, 0, 1, 1], [], []>} : vector<8x128xf32>, vector<128x128xf32>, vector<8x128xf32> -> vector<8x128xf32>
    %8 = arith.addf %6, %7 : vector<8x128xf32>
    %9 = math.sqrt %8 : vector<8x128xf32>
    %c0_4 = arith.constant 0 : index
    %c0_5 = arith.constant 0 : index
    %10 = vector.load %arg3[%c0_4, %c0_5] : memref<1x128xf32, #tpu.memory_space<vmem>>, vector<1x128xf32>
    %11 = vector.broadcast %10 : vector<1x128xf32> to vector<8x128xf32>
    %12 = arith.addf %9, %11 : vector<8x128xf32>
    %cst_6 = arith.constant 5.000000e-01 : f32
    %13 = vector.broadcast %cst_6 : f32 to vector<8x128xf32>
    %14 = arith.mulf %13, %12 : vector<8x128xf32>
    %cst_7 = arith.constant 0.707106769 : f32
    %15 = vector.broadcast %cst_7 : f32 to vector<8x128xf32>
    %16 = arith.mulf %12, %15 : vector<8x128xf32>
    %17 = math.erf %16 : vector<8x128xf32>
    %cst_8 = arith.constant 1.000000e+00 : f32
    %18 = vector.broadcast %cst_8 : f32 to vector<8x128xf32>
    %19 = arith.addf %18, %17 : vector<8x128xf32>
    %20 = arith.mulf %14, %19 : vector<8x128xf32>
    %cst_9 = arith.constant 9.99999997E-7 : f32
    %21 = vector.broadcast %cst_9 : f32 to vector<8x128xf32>
    %22 = arith.addf %9, %21 : vector<8x128xf32>
    %23 = tpu.reciprocal %22 {approx = true} : vector<8x128xf32> -> vector<8x128xf32>
    %24 = arith.mulf %22, %23 : vector<8x128xf32>
    %cst_10 = arith.constant 2.000000e+00 : f32
    %25 = vector.broadcast %cst_10 : f32 to vector<8x128xf32>
    %26 = arith.subf %25, %24 : vector<8x128xf32>
    %27 = arith.mulf %23, %26 : vector<8x128xf32>
    %28 = arith.mulf %20, %27 : vector<8x128xf32>
    %29 = arith.mulf %0, %28 : vector<8x128xf32>
    %c0_11 = arith.constant 0 : index
    %c0_12 = arith.constant 0 : index
    %30 = vector.load %arg5[%c0_11, %c0_12] : memref<8x128xf32, #tpu.memory_space<vmem>>, vector<8x128xf32>
    tpu.vector_store %arg5[%c0_11, %c0_12], %29 {strides = array<i32>} : memref<8x128xf32, #tpu.memory_space<vmem>>, vector<8x128xf32>,
    return
  }
  func.func @transform_0(%arg0: i32, %arg1: i32) -> (i32, i32) {
    %c0_i32 = arith.constant 0 : i32
    return %arg0, %arg1 : i32, i32
  }
  func.func @transform_1(%arg0: i32, %arg1: i32) -> (i32, i32) {
    %c0_i32 = arith.constant 0 : i32
    %c0_i32_0 = arith.constant 0 : i32
    return %c0_i32, %arg1 : i32, i32
  }
  func.func @transform_2(%arg0: i32, %arg1: i32) -> (i32, i32) {
    %c0_i32 = arith.constant 0 : i32
    %c0_i32_0 = arith.constant 0 : i32
    %c0_i32_1 = arith.constant 0 : i32
    return %c0_i32, %c0_i32_0 : i32, i32
  }
  func.func @transform_3(%arg0: i32, %arg1: i32) -> (i32, i32) {
    %c0_i32 = arith.constant 0 : i32
    return %arg0, %arg1 : i32, i32
  }
}

</mosaic_0001>

<llo_original>
// kernel: tpu_custom_call.1
$region0: #{tpu_custom_call.1}
  #allocation0 [shape = 'u32[]', space=smem, size = 0x4, offset = 0x4, fixed_abs, tag = 'smem constant byte address 0x4 - core index']
  #allocation1 [shape = 'u32[72,128]{1,0:T(1,128)}', space=vmem, size = 0x9000, scoped, tag = 'internal scratch']
  %s0 = inlined_call_operand.hbm [shape: f32[16,128], index: 0, kind: input, shape index: {}]
  %s1 = inlined_call_operand.hbm [shape: f32[1,128], index: 1, kind: input, shape index: {}]
  %s2 = inlined_call_operand.hbm [shape: f32[128,128], index: 2, kind: input, shape index: {}]
  %s3 = inlined_call_operand.hbm [shape: f32[16,128], index: 3, kind: output, shape index: {}]
  %s4 = sld [smem:[#allocation0]]
  $region57: #{tpu_custom_call.1} parent=0
    _
  %s6 = ssub.s32 1, %s4
  %s7 = scalar_select 0, %s6, %s4
  $region1: #{tpu_custom_call.1} parent=0
    #allocation2 [shape = 'u8[8192]{0}', space=vmem, size = 0x2000, scoped, tag = 'input window, operand 0']
    #allocation3 [shape = 's32[2]{0}', space=sflag, size = 0x8, scoped, tag = 'scoped memory for tpu_custom_call.1']
    #allocation4 [shape = 's32[2]{0}', space=sflag, size = 0x8, scoped, tag = 'scoped memory for tpu_custom_call.1']
    #allocation5 [shape = 'u8[512]{0}', space=vmem, size = 0x400, scoped, tag = 'input window, operand 1, single buffered']
    #allocation6 [shape = 's32[1]{0}', space=sflag, size = 0x4, scoped, tag = 'scoped memory for tpu_custom_call.1']
    #allocation7 [shape = 'u8[65536]{0}', space=vmem, size = 0x10000, scoped, tag = 'input window, operand 2, single buffered']
    #allocation8 [shape = 'u8[8192]{0}', space=vmem, size = 0x2000, scoped, tag = 'output window, operand 0']
    %8 = vsyncpa [#allocation3], 0
    %s9 = scalar_lea.sflag [#allocation3], 1
    %10 = vsyncpa %s9, 0
    %11 = vsyncpa [#allocation6], 0
    %12 = vsyncpa [#allocation4], 0
    %s13 = scalar_lea.sflag [#allocation4], 1
    %14 = vsyncpa %s13, 0
    loop: start=0, step=1, limit=4
    $region2: #{tpu_custom_call.1} parent=1 // loop_pre_header
      _
    $region3: #{tpu_custom_call.1} parent=1 // loop_header
      %s16 = sphi 0, %s20
      %p17 = scmp.ge.s32.totalorder %s16, 4
      %s23 = sphi 0, %s35
      %s24 = sphi 0, %s31
      %s25 = sphi 0, %s23
      %s26 = sphi 0, %s24
      %s27 = sphi 0, %s25
      %s28 = sphi 0, %s26
      %s40 = sphi 0, %s42
      %s43 = sphi 0, %s40
      %s44 = sphi 0, %s43
      %s60 = sphi 0, %s44
      %s66 = sphi 0, %s68
      %s69 = sphi 0, %s66
      %s70 = sphi 0, %s69
      %s86 = sphi 0, %s70
      %s90 = sphi 0, %s90
      %s92 = sphi 0, %s90
      %s93 = sphi 0, %s92
      %s107 = sphi 0, %s93
      %s115 = sphi 0, %s117
      %s118 = sphi 0, %s115
      %s119 = sphi 0, %s118
      %s135 = sphi 0, %s119
    $region4: #{tpu_custom_call.1} parent=1 // loop_header_branch
      %19 = sbr.rel (%p17) target = $region8
    $region5: #{tpu_custom_call.1} parent=1 // loop_body
      %s21 = ssub.s32 %s16, 1
      %s22 = ssub.s32 %s16, 2
      %s29 = sadd.s32 1, %s24
      %p30 = scmp.ge.s32.totalorder %s29, 1
      %s31 = scalar_select %p30, 0, %s29
      %s32 = sadd.s32 1, %s23
      %s33 = scalar_select %p30, %s32, %s23
      %p34 = scmp.ge.s32.totalorder %s33, 2
      %s35 = scalar_select %p34, 0, %s33
      %s36 = ssub.s32 %s23, %s35
      %s37 = ssub.s32 %s24, %s31
      %s38 = sor.u32 %s36, %s37
      %p39 = scmp.eq.s32.totalorder %s38, 0
      %s41 = sadd.s32 %s40, 1
      %s42 = scalar_select %p39, %s40, %s41
      %p45 = pneg %p39
      %p46 = scmp.eq.s32.totalorder %s16, 1
      %p47 = por %p45, %p46
      %p48 = scmp.ne.s32.totalorder %s40, %s43
      %p49 = scmp.eq.s32.totalorder %s16, 0
      %p50 = por %p48, %p49
      %p51 = scmp.ne.s32.totalorder %s40, %s43
      %p52 = scmp.eq.s32.totalorder %s21, 1
      %p53 = por %p51, %p52
      %p54 = scmp.ne.s32.totalorder %s43, %s44
      %p55 = scmp.eq.s32.totalorder %s21, 0
      %p56 = por %p54, %p55
      %p57 = scmp.ne.s32.totalorder %s43, %s44
      %p58 = scmp.eq.s32.totalorder %s22, 1
      %p59 = por %p57, %p58
      %p61 = scmp.ne.s32.totalorder %s44, %s60
      %p62 = scmp.eq.s32.totalorder %s22, 0
      %p63 = por %p61, %p62
      %s64 = ssub.s32 %s24, %s31
      %p65 = scmp.eq.s32.totalorder %s64, 0
      %s67 = sadd.s32 %s66, 1
      %s68 = scalar_select %p65, %s66, %s67
      %p71 = pneg %p65
      %p72 = scmp.eq.s32.totalorder %s16, 1
      %p73 = por %p71, %p72
      %p74 = scmp.ne.s32.totalorder %s66, %s69
      %p75 = scmp.eq.s32.totalorder %s16, 0
      %p76 = por %p74, %p75
      %p77 = scmp.ne.s32.totalorder %s66, %s69
      %p78 = scmp.eq.s32.totalorder %s21, 1
      %p79 = por %p77, %p78
      %p80 = scmp.ne.s32.totalorder %s69, %s70
      %p81 = scmp.eq.s32.totalorder %s21, 0
      %p82 = por %p80, %p81
      %p83 = scmp.ne.s32.totalorder %s69, %s70
      %p84 = scmp.eq.s32.totalorder %s22, 1
      %p85 = por %p83, %p84
      %p87 = scmp.ne.s32.totalorder %s70, %s86
      %p88 = scmp.eq.s32.totalorder %s22, 0
      %p89 = por %p87, %p88
      %s91 = sadd.s32 %s90, 1
      %p94 = scmp.eq.s32.totalorder %s16, 1
      %p95 = scmp.ne.s32.totalorder %s90, %s92
      %p96 = scmp.eq.s32.totalorder %s16, 0
      %p97 = por %p95, %p96
      %p98 = scmp.ne.s32.totalorder %s90, %s92
      %p99 = scmp.eq.s32.totalorder %s21, 1
      %p100 = por %p98, %p99
      %p101 = scmp.ne.s32.totalorder %s92, %s93
      %p102 = scmp.eq.s32.totalorder %s21, 0
      %p103 = por %p101, %p102
      %p104 = scmp.ne.s32.totalorder %s92, %s93
      %p105 = scmp.eq.s32.totalorder %s22, 1
      %p106 = por %p104, %p105
      %p108 = scmp.ne.s32.totalorder %s93, %s107
      %p109 = scmp.eq.s32.totalorder %s22, 0
      %p110 = por %p108, %p109
      %s111 = ssub.s32 %s23, %s35
      %s112 = ssub.s32 %s24, %s31
      %s113 = sor.u32 %s111, %s112
      %p114 = scmp.eq.s32.totalorder %s113, 0
      %s116 = sadd.s32 %s115, 1
      %s117 = scalar_select %p114, %s115, %s116
      %p120 = pneg %p114
      %p121 = scmp.eq.s32.totalorder %s16, 1
      %p122 = por %p120, %p121
      %p123 = scmp.ne.s32.totalorder %s115, %s118
      %p124 = scmp.eq.s32.totalorder %s16, 0
      %p125 = por %p123, %p124
      %p126 = scmp.ne.s32.totalorder %s115, %s118
      %p127 = scmp.eq.s32.totalorder %s21, 1
      %p128 = por %p126, %p127
      %p129 = scmp.ne.s32.totalorder %s118, %s119
      %p130 = scmp.eq.s32.totalorder %s21, 0
      %p131 = por %p129, %p130
      %p132 = scmp.ne.s32.totalorder %s118, %s119
      %p133 = scmp.eq.s32.totalorder %s22, 1
      %p134 = por %p132, %p133
      %p136 = scmp.ne.s32.totalorder %s119, %s135
      %p137 = scmp.eq.s32.totalorder %s22, 0
      %p138 = por %p136, %p137
      %p139 = scmp.le.s32.totalorder 1, %s16
      %p140 = scmp.lt.s32.totalorder %s16, 3
      %p141 = pnand %p139, %p140
      %p142 = pneg %p141
      // Predicated region
      $region9: #{tpu_custom_call.1} parent=5 // pred_check
        _
      $region10: #{tpu_custom_call.1} parent=5 // pred_check_branch
        %144 = sbr.rel (%p141) target = $region12
      $region11: #{tpu_custom_call.1} parent=5 // pred_region
        %s145 = ssub.s32 %s16, 1
        // Predicated region
        $region13: #{tpu_custom_call.1} parent=11 // pred_check
          %p146 = pneg %p82
        $region14: #{tpu_custom_call.1} parent=11 // pred_check_branch
          %148 = sbr.rel (%p146) target = $region16
        $region15: #{tpu_custom_call.1} parent=11 // pred_region
          %150 = vsyncadd [#allocation6], 0
          %s151 = scalar_lea.hbm %s1, %s26
          %s153 = sshll.u32 %s151, 4
          %s154 = int_to_ptr.hbm [resolvable:$true] %s153
          %s155 = sshll.u32 [#allocation5], 4
          %s156 = int_to_ptr.vmem [resolvable:$true] %s155
          %158 = dma.hbm_to_vmem [thread:$0]  %s154, 16, %s156, [#allocation6]
        $region16: #{tpu_custom_call.1} parent=11 // pred_fallthru
          _
        // Predicated region
        $region17: #{tpu_custom_call.1} parent=11 // pred_check
          %p159 = pneg %p103
        $region18: #{tpu_custom_call.1} parent=11 // pred_check_branch
          %161 = sbr.rel (%p159) target = $region20
        $region19: #{tpu_custom_call.1} parent=11 // pred_region
          %163 = vsyncadd [#allocation6], 0
          %s164 = sshll.u32 %s2, 4
          %s165 = int_to_ptr.hbm [resolvable:$true] %s164
          %s166 = sshll.u32 [#allocation7], 4
          %s167 = int_to_ptr.vmem [resolvable:$true] %s166
          %172 = dma.hbm_to_vmem [thread:$0]  %s165, 2048, %s167, [#allocation6], 128, 128, 8
        $region20: #{tpu_custom_call.1} parent=11 // pred_fallthru
          _
      $region12: #{tpu_custom_call.1} parent=5 // pred_fallthru
        _
      %p173 = scmp.lt.s32.totalorder %s16, 2
      // Predicated region
      $region21: #{tpu_custom_call.1} parent=5 // pred_check
        %p174 = pneg %p173
      $region22: #{tpu_custom_call.1} parent=5 // pred_check_branch
        %176 = sbr.rel (%p174) target = $region24
      $region23: #{tpu_custom_call.1} parent=5 // pred_region
        // Predicated region
        $region25: #{tpu_custom_call.1} parent=23 // pred_check
          %p177 = pneg %p50
        $region26: #{tpu_custom_call.1} parent=23 // pred_check_branch
          %179 = sbr.rel (%p177) target = $region28
        $region27: #{tpu_custom_call.1} parent=23 // pred_region
          %s180 = sand.u32 %s40, 1
          %s181 = scalar_lea.sflag [#allocation3], %s180
          %s182 = sand.u32 %s40, 1
          %s183 = smul.addr %s182, 8
          %s184 = scalar_lea.vmem [#allocation2], %s183
          %186 = vsyncadd %s181, 0
          %s187 = sadd.s32 %s24, %s23
          %s188 = smul.addr %s187, 8
          %s189 = scalar_lea.hbm %s0, %s188
          %s191 = sshll.u32 %s189, 4
          %s192 = int_to_ptr.hbm [resolvable:$true] %s191
          %s193 = sshll.u32 %s184, 4
          %s194 = int_to_ptr.vmem [resolvable:$true] %s193
          %196 = dma.hbm_to_vmem [thread:$0]  %s192, 128, %s194, %s181
        $region28: #{tpu_custom_call.1} parent=23 // pred_fallthru
          _
      $region24: #{tpu_custom_call.1} parent=5 // pred_fallthru
        _
      %p197 = scmp.le.s32.totalorder 1, %s16
      %p198 = scmp.lt.s32.totalorder %s16, 3
      %p199 = pnand %p197, %p198
      %p200 = pneg %p199
      // Predicated region
      $region29: #{tpu_custom_call.1} parent=5 // pred_check
        _
      $region30: #{tpu_custom_call.1} parent=5 // pred_check_branch
        %202 = sbr.rel (%p199) target = $region32
      $region31: #{tpu_custom_call.1} parent=5 // pred_region
        %s203 = ssub.s32 %s16, 1
        %s204 = sand.u32 %s43, 1
        %s205 = scalar_lea.sflag [#allocation3], %s204
        %s206 = sand.u32 %s43, 1
        %s207 = smul.addr %s206, 8
        %s208 = scalar_lea.vmem [#allocation2], %s207
        // Predicated region
        $region33: #{tpu_custom_call.1} parent=31 // pred_check
          %p209 = pneg %p56
        $region34: #{tpu_custom_call.1} parent=31 // pred_check_branch
          %211 = sbr.rel (%p209) target = $region36
        $region35: #{tpu_custom_call.1} parent=31 // pred_region
          %213 = dma.done %s205, 128
        $region36: #{tpu_custom_call.1} parent=31 // pred_fallthru
          _
        // Predicated region
        $region37: #{tpu_custom_call.1} parent=31 // pred_check
          %p214 = pneg %p82
        $region38: #{tpu_custom_call.1} parent=31 // pred_check_branch
          %216 = sbr.rel (%p214) target = $region40
        $region39: #{tpu_custom_call.1} parent=31 // pred_region
          %218 = dma.done [#allocation6], 16
        $region40: #{tpu_custom_call.1} parent=31 // pred_fallthru
          _
        // Predicated region
        $region41: #{tpu_custom_call.1} parent=31 // pred_check
          %p219 = pneg %p103
        $region42: #{tpu_custom_call.1} parent=31 // pred_check_branch
          %221 = sbr.rel (%p219) target = $region44
        $region43: #{tpu_custom_call.1} parent=31 // pred_region
          %223 = dma.done [#allocation6], 2048
        $region44: #{tpu_custom_call.1} parent=31 // pred_fallthru
          _
        %s224 = sand.u32 %s43, 1
        %s225 = scalar_lea.sflag [#allocation3], %s224
        %s226 = sand.u32 %s43, 1
        %s227 = smul.addr %s226, 8
        %s228 = scalar_lea.vmem [#allocation2], %s227
        %p229 = pneg %p56
        %p230 = pneg %p53
        %p231 = pneg %p82
        %p232 = pneg %p79
        %p233 = pneg %p103
        %p234 = pneg %p100
        %p235 = pneg %p131
        %p236 = pneg %p128
        %s237 = sand.u32 %s118, 1
        %s238 = scalar_lea.sflag [#allocation4], %s237
        %s239 = sand.u32 %s118, 1
        %s240 = smul.addr %s239, 8
        %s241 = scalar_lea.vmem [#allocation8], %s240
        %v242 = vld [vmem:[%s208] sm:$0xff]
        %v243 = vmul.f32 %v242, %v242
        %v244 = vpack.c.bf16 %v243, %v243
        %v245 = vunpack.c.l.bf16 %v244
        %v246 = vsub.f32 %v243, %v245
        %v247 = vld [vmem:[#allocation7] sm:$0xff]
        %v248 = vld [vmem:[#allocation7 + $0x8] sm:$0xff]
        %v249 = vld [vmem:[#allocation7 + $0x10] sm:$0xff]
        %v250 = vld [vmem:[#allocation7 + $0x18] sm:$0xff]
        %v251 = vld [vmem:[#allocation7 + $0x20] sm:$0xff]
        %v252 = vld [vmem:[#allocation7 + $0x28] sm:$0xff]
        %v253 = vld [vmem:[#allocation7 + $0x30] sm:$0xff]
        %v254 = vld [vmem:[#allocation7 + $0x38] sm:$0xff]
        %v255 = vld [vmem:[#allocation7 + $0x40] sm:$0xff]
        %v256 = vld [vmem:[#allocation7 + $0x48] sm:$0xff]
        %v257 = vld [vmem:[#allocation7 + $0x50] sm:$0xff]
        %v258 = vld [vmem:[#allocation7 + $0x58] sm:$0xff]
        %v259 = vld [vmem:[#allocation7 + $0x60] sm:$0xff]
        %v260 = vld [vmem:[#allocation7 + $0x68] sm:$0xff]
        %v261 = vld [vmem:[#allocation7 + $0x70] sm:$0xff]
        %v262 = vld [vmem:[#allocation7 + $0x78] sm:$0xff]
        %263 = vmatpush.msra.mxu0 %v262
        %264 = vmatpush.msra.mxu0 %v261
        %265 = vmatpush.msra.mxu0 %v260
        %266 = vmatpush.msra.mxu0 %v259
        %267 = vmatpush.msra.mxu0 %v258
        %268 = vmatpush.msra.mxu0 %v257
        %269 = vmatpush.msra.mxu0 %v256
        %270 = vmatpush.msra.mxu0 %v255
        %271 = vmatpush.msra.mxu0 %v254
        %272 = vmatpush.msra.mxu0 %v253
        %273 = vmatpush.msra.mxu0 %v252
        %274 = vmatpush.msra.mxu0 %v251
        %275 = vmatpush.msra.mxu0 %v250
        %276 = vmatpush.msra.mxu0 %v249
        %277 = vmatpush.msra.mxu0 %v248
        %278 = vmatpush.msra.mxu0 %v247
        %279 = vmatmul.f32.gmra.mxu0 %v246
        %v280 = vpop.f32.mrf.mxu0
        %v281 = vadd.f32 0.0, %v280
        %282 = vdwg.mxu0
        %283 = vmatpush.msra.mxu0 %v262
        %284 = vmatpush.msra.mxu0 %v261
        %285 = vmatpush.msra.mxu0 %v260
        %286 = vmatpush.msra.mxu0 %v259
        %287 = vmatpush.msra.mxu0 %v258
        %288 = vmatpush.msra.mxu0 %v257
        %289 = vmatpush.msra.mxu0 %v256
        %290 = vmatpush.msra.mxu0 %v255
        %291 = vmatpush.msra.mxu0 %v254
        %292 = vmatpush.msra.mxu0 %v253
        %293 = vmatpush.msra.mxu0 %v252
        %294 = vmatpush.msra.mxu0 %v251
        %295 = vmatpush.msra.mxu0 %v250
        %296 = vmatpush.msra.mxu0 %v249
        %297 = vmatpush.msra.mxu0 %v248
        %298 = vmatpush.msra.mxu0 %v247
        %299 = vmatmul.f32.gmra.mxu0 %v245
        %v300 = vpop.f32.mrf.mxu0
        %v301 = vadd.f32 %v281, %v300
        %302 = vdwg.mxu0
        %v303 = vrsqrt.pop %v301
        %v304 = vmul.f32 %v303, %v301
        %v305 = vmul.f32 %v304, %v303
        %v306 = vmul.f32 0.5, %v305
        %v307 = vsub.f32 1.5, %v306
        %v308 = vmul.f32 %v303, %v307
        %v309 = vmul.f32 %v301, %v308
        %vm310 = vcmp.eq.f32.partialorder %v301, inf
        %v311 = vsel %vm310, %v301, %v309
        %vm312 = vcmp.eq.f32.partialorder %v301, 0.0
        %v313 = vand.u32 %v301, 2147483648
        %v314 = vsel %vm312, %v313, %v311
        %v315 = vld [vmem:[#allocation5] sm:$0x1]
        %v317 = vperm.slane %v315, 0
        %v319 = vadd.f32 %v314, %v317
        %v320 = vmul.f32 %v319, 0.5
        %v321 = vmul.f32 %v319, 0.70710677
        %v322 = vmul.f32 %v321, %v321
        %v323 = vmin.f32 16.0, %v322
        %v324 = vmul.f32 %v323, 2.1237322e-06
        %v325 = vadd.f32 %v324, 0.00028619796
        %v326 = vmul.f32 %v323, %v325
        %v327 = vadd.f32 %v326, 0.0036580483
        %v328 = vmul.f32 %v323, %v327
        %v329 = vadd.f32 %v328, 0.05243302
        %v330 = vmul.f32 %v323, %v329
        %v331 = vadd.f32 %v330, 0.18741608
        %v332 = vmul.f32 %v323, %v331
        %v333 = vadd.f32 %v332, 1.1283791
        %v334 = vmul.f32 %v321, %v333
        %v335 = vmul.f32 %v323, 3.8918573e-05
        %v336 = vadd.f32 %v335, 0.001143296
        %v337 = vmul.f32 %v323, %v336
        %v338 = vadd.f32 %v337, 0.014752088
        %v339 = vmul.f32 %v323, %v338
        %v340 = vadd.f32 %v339, 0.112945676
        %v341 = vmul.f32 %v323, %v340
        %v342 = vadd.f32 %v341, 0.4994258
        %v343 = vmul.f32 %v323, %v342
        %v344 = vadd.f32 %v343, 1.0
        %v345 = vrcp.pop %v344
        %v346 = vmul.f32 %v344, %v345
        %v347 = vsub.f32 1.0, %v346
        %v348 = vmul.f32 %v345, %v347
        %v349 = vadd.f32 %v345, %v348
        %vm350 = vweird.f32 %v344
        %vm351 = vweird.f32 %v345
        %vm352 = vmor %vm350, %vm351
        %v353 = vsel %vm352, %v345, %v349
        %v354 = vand.u32 2147483647, %v344
        %vm355 = vcmp.eq.f32.partialorder %v354, 8.507059e+37
        %v356 = vand.u32 %v344, 2147483648
        %v357 = vor.u32 1.1754944e-38, %v356
        %v358 = vsel %vm355, %v357, %v353
        %v359 = vmul.f32 %v334, %v358
        %v360 = vmin.f32 %v359, 1.0
        %v361 = vmax.f32 %v360, -1.0
        %v362 = vadd.f32 %v361, 1.0
        %v363 = vmul.f32 %v320, %v362
        %v364 = vadd.f32 %v314, 1e-06
        %v365 = vrcp.pop %v364
        %v366 = vmul.f32 %v364, %v365
        %v367 = vsub.f32 2.0, %v366
        %v368 = vmul.f32 %v365, %v367
        %v369 = vmul.f32 %v363, %v368
        %v370 = vmul.f32 %v242, %v369
        %371 = vst [vmem:[%s241] sm:$0xff] %v370
        %s372 = sand.u32 %s118, 1
        %s373 = scalar_lea.sflag [#allocation4], %s372
        %s374 = sand.u32 %s118, 1
        %s375 = smul.addr %s374, 8
        %s376 = scalar_lea.vmem [#allocation8], %s375
        // Predicated region
        $region45: #{tpu_custom_call.1} parent=31 // pred_check
          %p377 = pneg %p128
        $region46: #{tpu_custom_call.1} parent=31 // pred_check_branch
          %379 = sbr.rel (%p377) target = $region48
        $region47: #{tpu_custom_call.1} parent=31 // pred_region
          %381 = vsyncadd %s373, 0
          %s382 = sadd.s32 %s26, %s25
          %s383 = smul.addr %s382, 8
          %s384 = scalar_lea.hbm %s3, %s383
          %s386 = sshll.u32 %s376, 4
          %s387 = int_to_ptr.vmem [resolvable:$true] %s386
          %s388 = sshll.u32 %s384, 4
          %s389 = int_to_ptr.hbm [resolvable:$true] %s388
          %391 = dma.vmem_to_hbm [thread:$0]  %s387, 128, %s389, %s373
        $region48: #{tpu_custom_call.1} parent=31 // pred_fallthru
          _
      $region32: #{tpu_custom_call.1} parent=5 // pred_fallthru
        _
      %p392 = scmp.le.s32.totalorder 2, %s16
      // Predicated region
      $region49: #{tpu_custom_call.1} parent=5 // pred_check
        %p393 = pneg %p392
      $region50: #{tpu_custom_call.1} parent=5 // pred_check_branch
        %395 = sbr.rel (%p393) target = $region52
      $region51: #{tpu_custom_call.1} parent=5 // pred_region
        %s396 = ssub.s32 %s16, 2
        // Predicated region
        $region53: #{tpu_custom_call.1} parent=51 // pred_check
          %p397 = pneg %p134
        $region54: #{tpu_custom_call.1} parent=51 // pred_check_branch
          %399 = sbr.rel (%p397) target = $region56
        $region55: #{tpu_custom_call.1} parent=51 // pred_region
          %s400 = sand.u32 %s119, 1
          %s401 = scalar_lea.sflag [#allocation4], %s400
          %s402 = sand.u32 %s119, 1
          %s403 = smul.addr %s402, 8
          %s404 = scalar_lea.vmem [#allocation8], %s403
          %406 = dma.done %s401, 128
        $region56: #{tpu_custom_call.1} parent=51 // pred_fallthru
          _
      $region52: #{tpu_custom_call.1} parent=5 // pred_fallthru
        _
    $region6: #{tpu_custom_call.1} parent=1 // loop_footer
      %s20 = sadd.s32 1, %s16
    $region7: #{tpu_custom_call.1} parent=1 // loop_footer_branch
      %15 = sbr.rel target = $region3
    $region8: #{tpu_custom_call.1} parent=1 // loop_exit
      _
    %407 = vsyncpa [#allocation3], 1
    %s408 = scalar_lea.sflag [#allocation3], 1
    %409 = vsyncpa %s408, 1
    %410 = vsyncpa [#allocation6], 1
    %411 = vsyncpa [#allocation4], 1
    %s412 = scalar_lea.sflag [#allocation4], 1
    %413 = vsyncpa %s412, 1

</llo_original>
